<compile_context>
chip_gen: v7x
topology: tpu7x:2x2x1
jax: 0.10.0
libtpu: 0.0.40
codegen_flags: <defaults>
</compile_context>

<pallas_src>
import math

import jax
import jax.numpy as jnp
from jax.experimental import pallas as pl
from jax.experimental.pallas import tpu as pltpu


_SMALL_TABLE_BYTES = 512 * 1024  # below this, fused jnp beats pallas_call overhead


def _chip_tuning():
    """Pick (output block target bytes, vmem_limit_bytes) per TPU generation."""
    block_target, vmem_limit = 8 << 20, 32 << 20          # safe fallback
    try:
        info = pltpu.get_tpu_info()
        vmem_cap = getattr(info, "vmem_capacity_bytes", None)
        if vmem_cap:
            if vmem_cap >= (96 << 20):                    # v5e / v6e: 128 MiB physical
                block_target, vmem_limit = 12 << 20, 64 << 20
            else:                                         # v7x: 64 MiB physical
                block_target, vmem_limit = 10 << 20, 32 << 20
    except Exception:
        pass
    return block_target, vmem_limit


def _pick_row_tile(rows, lane_width, block_target_bytes, min_steps=2):
    """Row tile: byte-bounded, multiple of 8, >=2 (even) grid steps for megacore."""
    if rows <= 8:
        return rows                                       # single full-extent block
    bytes_per_row = lane_width * 4
    cap = max(8, (block_target_bytes // bytes_per_row // 8) * 8)
    steps = -(-rows // cap)
    if rows >= 16 * min_steps:                            # worth sharding across 2 TCs
        steps = max(steps, min_steps)
    if steps > 1 and steps % 2 == 1:
        steps += 1                                        # even step count balances the TCs
    if steps <= 1:
        return rows                                       # full extent, within budget
    r_tile = -(-rows // steps)
    return ((r_tile + 7) // 8) * 8                        # multiple of 8; masked tail via cdiv grid


def _rope_kernel(consts_ref, out_ref):
    # consts_ref: (2, L)   row 0 = pack * pattern ; row 1 = phase * pattern
    # out_ref:    (r_tile, L) lane-dense tile of the packed (rows, L) RoPE table
    r_tile = out_ref.shape[0]
    pattern2 = consts_ref[0:1, :]                         # (1, L)
    off = consts_ref[1:2, :]                              # (1, L)
    base_rows = (pl.program_id(0) * r_tile).astype(jnp.float32)
    c = base_rows * pattern2 + off                        # once per grid step
    row = jax.lax.broadcasted_iota(jnp.int32, out_ref.shape, 0).astype(jnp.float32)
    out_ref[...] = row * pattern2 + c                     # ~2 VALU ops / element


def rotary_position_encoding(seq_len: int, dim: int, *, force_pallas: bool = False) -> jax.Array:
    assert dim % 2 == 0, "Dimension must be even for RoPE"
    assert seq_len >= 1

    # Same deterministic buffer as the PyTorch __init__.
    inv_freq = 1.0 / (10000.0 ** (jnp.arange(0, dim, 2, dtype=jnp.float32) / dim))
    inv_full = jnp.concatenate([inv_freq, inv_freq])      # (dim,) = [inv_freq, inv_freq]

    # Lane-dense packing for any even dim: pack = 128 / gcd(dim, 128) is a power of 2.
    pack = 128 // math.gcd(dim, 128)
    L = dim * pack                                        # = lcm(dim, 128), multiple of 128
    rows = -(-seq_len // pack)

    if not force_pallas and rows * L * 4 < _SMALL_TABLE_BYTES:
        # Tiny table: fixed pallas_call overhead dominates; XLA fuses this for free.
        t = jnp.arange(seq_len, dtype=jnp.float32)
        return (t[:, None] * inv_full[None, :])[None, :, :]

    pattern = jnp.tile(inv_full, pack)                                   # (L,)
    phase = jnp.repeat(jnp.arange(pack, dtype=jnp.float32), dim)         # (L,)
    consts = jnp.stack([pattern * float(pack), phase * pattern])         # (2, L)

    block_target, vmem_limit = _chip_tuning()
    r_tile = _pick_row_tile(rows, L, block_target)
    grid = (pl.cdiv(rows, r_tile),)

    table = pl.pallas_call(
        _rope_kernel,
        out_shape=jax.ShapeDtypeStruct((rows, L), jnp.float32),
        grid_spec=pltpu.PrefetchScalarGridSpec(
            num_scalar_prefetch=0,
            grid=grid,
            in_specs=[pl.BlockSpec((2, L), lambda i: (0, 0))],   # constants, fetched once
            out_specs=pl.BlockSpec((r_tile, L), lambda i: (i, 0)),
        ),
        compiler_params=pltpu.CompilerParams(
            dimension_semantics=("parallel",),
            vmem_limit_bytes=vmem_limit,
        ),
    )(consts)

    # Un-pack the lane-dense slab: (rows, L) -> (rows*pack, dim) -> (seq_len, dim)
    emb = table.reshape(rows * pack, dim)
    if rows * pack != seq_len:
        emb = emb[:seq_len]
    return emb[None, :, :]                                # (1, seq_len, dim), like the module


if __name__ == "__main__":
    _ = jax.random.PRNGKey(0)   # RoPE has no tensor inputs; key kept for harness convention

    def ref_rope(seq_len, dim):
        inv_freq = 1.0 / (10000.0 ** (jnp.arange(0, dim, 2, dtype=jnp.float32) / dim))
        t = jnp.arange(seq_len, dtype=jnp.float32)
        freqs = jnp.einsum("i,j->ij", t, inv_freq)
        return jnp.concatenate([freqs, freqs], axis=-1)[None]

    # (seq_len, dim, force_pallas)
    cases = [
        (8, 32, True),      # harness-scale shape, packed lanes, single block
        (7, 32, True),      # packed lanes with wrapper tail slice
        (1000, 64, True),   # multi-step grid (2 even steps), masked tail block
        (37, 128, True),    # dim multiple of 128 (pack=1), 2-step grid
        (100, 48, True),    # dim not dividing 128: lcm packing -> L=384, still lane-dense
        (8, 32, False),     # small-table jnp fast path
    ]
    for seq_len, dim, force in cases:
        out = jax.block_until_ready(
            rotary_position_encoding(seq_len, dim, force_pallas=force)
        )
        ref = ref_rope(seq_len, dim)
        assert out.shape == (1, seq_len, dim), (out.shape, seq_len, dim)
        assert out.dtype == jnp.float32
        assert jnp.allclose(out, ref, atol=1e-5, rtol=1e-6), (seq_len, dim)

    print("KERNEL_OK")
</pallas_src>

<mosaic_0001>
module attributes {stable_mosaic.version = 11 : i64} {
  func.func @_rope_kernel(%arg0: i32, %arg1: memref<2x128xf32, #tpu.memory_space<vmem>>, %arg2: memref<2x128xf32, #tpu.memory_space<vmem>>) attributes {dimension_semantics = [#tpu.dimension_semantics<parallel>], iteration_bounds = array<i64: 1>, scalar_prefetch = 0 : i64, scratch_operands = 0 : i64, tpu.core_type = #tpu.core_type<tc>, window_params = [{pipeline_mode = #tpu.pipeline_mode<synchronous>, transform_indices = @transform_0, window_bounds = array<i64: 2, 128>}, {transform_indices = @transform_1, window_bounds = array<i64: 2, 128>}]} {
    %c0 = arith.constant 0 : index
    %c0_0 = arith.constant 0 : index
    %0 = vector.load %arg1[%c0, %c0_0] : memref<2x128xf32, #tpu.memory_space<vmem>>, vector<1x128xf32>
    %c1 = arith.constant 1 : index
    %c0_1 = arith.constant 0 : index
    %1 = vector.load %arg1[%c1, %c0_1] : memref<2x128xf32, #tpu.memory_space<vmem>>, vector<1x128xf32>
    %c2_i32 = arith.constant 2 : i32
    %2 = arith.muli %arg0, %c2_i32 : i32
    %3 = arith.sitofp %2 : i32 to f32
    %4 = vector.broadcast %3 : f32 to vector<1x128xf32>
    %5 = arith.mulf %4, %0 : vector<1x128xf32>
    %6 = arith.addf %5, %1 : vector<1x128xf32>
    %7 = tpu.iota {dimensions = array<i32: 0>} : vector<2x128xi32>
    %8 = arith.sitofp %7 : vector<2x128xi32> to vector<2x128xf32>
    %9 = vector.broadcast %0 : vector<1x128xf32> to vector<2x128xf32>
    %10 = arith.mulf %8, %9 : vector<2x128xf32>
    %11 = vector.broadcast %6 : vector<1x128xf32> to vector<2x128xf32>
    %12 = arith.addf %10, %11 : vector<2x128xf32>
    %c0_2 = arith.constant 0 : index
    %c0_3 = arith.constant 0 : index
    %13 = vector.load %arg2[%c0_2, %c0_3] : memref<2x128xf32, #tpu.memory_space<vmem>>, vector<2x128xf32>
    tpu.vector_store %arg2[%c0_2, %c0_3], %12 {strides = array<i32>} : memref<2x128xf32, #tpu.memory_space<vmem>>, vector<2x128xf32>,
    return
  }
  func.func @transform_0(%arg0: i32) -> (i32, i32) {
    %c0_i32 = arith.constant 0 : i32
    %c0_i32_0 = arith.constant 0 : i32
    %c0_i32_1 = arith.constant 0 : i32
    return %c0_i32, %c0_i32_0 : i32, i32
  }
  func.func @transform_1(%arg0: i32) -> (i32, i32) {
    %c0_i32 = arith.constant 0 : i32
    %c0_i32_0 = arith.constant 0 : i32
    return %arg0, %c0_i32 : i32, i32
  }
}

</mosaic_0001>

<llo_original>
// kernel: tpu_custom_call.1
$region0: #{tpu_custom_call.1}
  #allocation0 [shape = 'u32[]', space=smem, size = 0x4, offset = 0x4, fixed_abs, tag = 'smem constant byte address 0x4 - core index']
  #allocation1 [shape = 'u32[144,128]{1,0:T(1,128)}', space=vmem, size = 0x12000, scoped, tag = 'internal scratch']
  %s0 = inlined_call_operand.hbm [shape: f32[2,128], index: 0, kind: input, shape index: {}]
  %s1 = inlined_call_operand.hbm [shape: f32[2,128], index: 1, kind: output, shape index: {}]
  %s2 = sld [smem:[#allocation0]]
  $region18: #{tpu_custom_call.1} parent=0
    _
  %s4 = ssub.s32 1, %s2
  %s5 = scalar_select 0, %s4, %s2
  $region1: #{tpu_custom_call.1} parent=0
    #allocation2 [shape = 'u8[1024]{0}', space=vmem, size = 0x400, scoped, tag = 'input window, operand 0, single buffered']
    #allocation3 [shape = 's32[1]{0}', space=sflag, size = 0x4, scoped, tag = 'scoped memory for tpu_custom_call.1']
    #allocation4 [shape = 's32[1]{0}', space=sflag, size = 0x4, scoped, tag = 'scoped memory for tpu_custom_call.1']
    #allocation5 [shape = 'u8[1024]{0}', space=vmem, size = 0x400, scoped, tag = 'output window, operand 0, single buffered']
    %6 = vsyncpa [#allocation3], 0
    %7 = vsyncpa [#allocation4], 0
    // Predicated region
    $region2: #{tpu_custom_call.1} parent=1 // pred_check
      _
    $region3: #{tpu_custom_call.1} parent=1 // pred_check_branch
      %9 = sbr.rel (0) target = $region5
    $region4: #{tpu_custom_call.1} parent=1 // pred_region
      %s11 = ssub.s32 32, 32
      %12 = vsyncadd [#allocation3], %s11
      %s14 = sshll.u32 [#allocation2], 4
      %s15 = int_to_ptr.vmem [resolvable:$true] %s14
      %17 = dma.hbm_to_vmem [thread:$0]  %s0, 32, %s15, [#allocation3]
    $region5: #{tpu_custom_call.1} parent=1 // pred_fallthru
      _
    // Predicated region
    $region6: #{tpu_custom_call.1} parent=1 // pred_check
      _
    $region7: #{tpu_custom_call.1} parent=1 // pred_check_branch
      %19 = sbr.rel (0) target = $region9
    $region8: #{tpu_custom_call.1} parent=1 // pred_region
      %20 = dma.done [#allocation3], 32
    $region9: #{tpu_custom_call.1} parent=1 // pred_fallthru
      _
    %v21 = vld [vmem:[#allocation2] sm:$0x1]
    %v22 = vld [vmem:[#allocation2 + $0x1] sm:$0x1]
    %s23 = smul.u32 0, 2
    %s24 = scvt.s32.f32 %s23
    %v25 = vstv %s24
    %v26 = vmul.f32 %v25, %v21
    %v27 = vadd.f32 %v26, %v22
    %v28 = vlaneseq
    %v29 = vshrl.u32 %v28, 7
    %v30 = vcvt.s32.f32 %v29
    %v31 = vlaneseq
    %v32 = vshrl.u32 %v31, 7
    %v33 = vsub.s32 0, %v32
    %v34 = vrot.slane %v21, %v33
    %v35 = vmul.f32 %v30, %v34
    %v36 = vlaneseq
    %v37 = vshrl.u32 %v36, 7
    %v38 = vsub.s32 0, %v37
    %v39 = vrot.slane %v27, %v38
    %v40 = vadd.f32 %v35, %v39
    %41 = vst [vmem:[#allocation5] sm:$0x3] %v40
    // Predicated region
    $region10: #{tpu_custom_call.1} parent=1 // pred_check
      _
    $region11: #{tpu_custom_call.1} parent=1 // pred_check_branch
      %43 = sbr.rel (0) target = $region13
    $region12: #{tpu_custom_call.1} parent=1 // pred_region
      %s45 = ssub.s32 32, 32
      %46 = vsyncadd [#allocation4], %s45
      %s48 = sshll.u32 [#allocation5], 4
      %s49 = int_to_ptr.vmem [resolvable:$true] %s48
      %51 = dma.vmem_to_hbm [thread:$0]  %s49, 32, %s1, [#allocation4]
    $region13: #{tpu_custom_call.1} parent=1 // pred_fallthru
      _
    // Predicated region
    $region14: #{tpu_custom_call.1} parent=1 // pred_check
      _
    $region15: #{tpu_custom_call.1} parent=1 // pred_check_branch
      %53 = sbr.rel (0) target = $region17
    $region16: #{tpu_custom_call.1} parent=1 // pred_region
      %54 = dma.done [#allocation4], 32
    $region17: #{tpu_custom_call.1} parent=1 // pred_fallthru
      _
    %55 = vsyncpa [#allocation3], 1
    %56 = vsyncpa [#allocation4], 1

</llo_original>
